<compile_context>
chip_gen: v5e
topology: v5e:2x2
jax: 0.10.0
libtpu: 0.0.40
codegen_flags: <defaults>
</compile_context>

<pallas_src>
import jax
import jax.numpy as jnp
from jax import lax
from jax.experimental import pallas as pl
from jax.experimental.pallas import tpu as pltpu

BN_EPS = 1e-5


def _round_up(x, m):
    return (x + m - 1) // m * m


def conv_stats_kernel(p_ref, w_ref, y_ref, stats_ref):
    """Pass 1: fused im2col matmul for one M-tile + per-tile partial sum / sumsq."""
    # p_ref: (TILE_M, Kp) bf16   w_ref: (Kp, Ctp) bf16
    # y_ref: (TILE_M, Ctp) bf16  stats_ref: (2, Ctp) f32 (leading grid dim squeezed)
    acc = jnp.dot(p_ref[...], w_ref[...], preferred_element_type=jnp.float32)
    y_ref[...] = acc.astype(y_ref.dtype)                # pre-BN conv output tile (bf16)

    s = jnp.sum(acc, axis=0, keepdims=True)             # (1, Ctp)
    sq = jnp.sum(acc * acc, axis=0, keepdims=True)      # (1, Ctp)
    stats_ref[...] = jnp.concatenate([s, sq], axis=0)   # per-tile partial -> no revisits


def bn_relu_kernel(y_ref, sb_ref, o_ref):
    """Pass 2: y * scale + shift (folded BN batch stats) + ReLU."""
    y = y_ref[...].astype(jnp.float32)
    o_ref[...] = jnp.maximum(y * sb_ref[0:1, :] + sb_ref[1:2, :], 0.0)


def conv_reg_forward(x_nchw, w_hwio, bias, gamma, beta, *, tile_m=512):
    """ConvReg forward. x_nchw: (N, s_C, s_H, s_W) -> (N, t_C, s_H//2, s_W//2)."""
    del bias  # per-channel conv bias is exactly cancelled by training-mode BN mean subtraction
    N, Cs, H, W = x_nchw.shape
    KH, KW, _, Ct = w_hwio.shape
    tH, tW = H // 2, W // 2
    M = N * tH * tW
    K = KH * KW * Cs
    Kp = _round_up(K, 128)                               # lane-dense contraction
    Ctp = _round_up(Ct, 128)                             # lane-dense output channels

    TILE_M = tile_m if M >= tile_m else _round_up(M, 16)
    num_tiles = pl.cdiv(M, TILE_M)
    Mp = num_tiles * TILE_M

    # ---- glue (plain JAX): NCHW -> NHWC, zero-pad, strided im2col into one (Mp, Kp) slab ----
    # TODO(synk): for very large feature maps, form the 9 taps in-kernel via manual DMA
    # (memory_space=pl.ANY) to avoid materializing the im2col slab in HBM.
    x = jnp.transpose(x_nchw, (0, 2, 3, 1))              # (N, H, W, Cs)
    x = jnp.pad(x, ((0, 0), (1, 1), (1, 1), (0, 0)))
    taps = []
    for kh in range(KH):
        for kw in range(KW):
            taps.append(lax.slice(x, (0, kh, kw, 0),
                                  (N, kh + 2 * tH - 1, kw + 2 * tW - 1, Cs),
                                  (1, 2, 2, 1)))         # (N, tH, tW, Cs)
    patches = jnp.concatenate(taps, axis=-1).reshape(M, K)          # (M, 9*Cs) tap-major
    patches = jnp.pad(patches, ((0, Mp - M), (0, Kp - K))).astype(jnp.bfloat16)

    w = w_hwio.reshape(K, Ct)                                       # tap-major, matches patches
    w = jnp.pad(w, ((0, Kp - K), (0, Ctp - Ct))).astype(jnp.bfloat16)

    # ---- pass 1: conv matmul (bf16 MXU, f32 acc) + per-tile partial channel stats ----
    y, stats_part = pl.pallas_call(
        conv_stats_kernel,
        out_shape=(jax.ShapeDtypeStruct((Mp, Ctp), jnp.bfloat16),
                   jax.ShapeDtypeStruct((num_tiles, 2, Ctp), jnp.float32)),
        grid=(num_tiles,),
        in_specs=[pl.BlockSpec((TILE_M, Kp), lambda i: (i, 0)),
                  pl.BlockSpec((Kp, Ctp), lambda i: (0, 0))],
        out_specs=(pl.BlockSpec((TILE_M, Ctp), lambda i: (i, 0)),
                   pl.BlockSpec((None, 2, Ctp), lambda i: (i, 0, 0))),
        compiler_params=pltpu.CompilerParams(
            dimension_semantics=("parallel",),           # no revisited block -> megacore-friendly
            vmem_limit_bytes=32 * 1024 * 1024),
    )(patches, w)

    # ---- tiny glue: global batch stats -> folded per-channel (scale, shift) ----
    stats = jnp.sum(stats_part, axis=0)                  # (2, Ctp)
    inv_m = 1.0 / float(M)
    mean = stats[0] * inv_m
    var = jnp.maximum(stats[1] * inv_m - mean * mean, 0.0)
    inv_std = lax.rsqrt(var + BN_EPS)
    gamma_p = jnp.pad(gamma.astype(jnp.float32), (0, Ctp - Ct))
    beta_p = jnp.pad(beta.astype(jnp.float32), (0, Ctp - Ct))
    scale = gamma_p * inv_std                            # gamma / std
    shift = beta_p - mean * scale                        # beta - mean*gamma/std
    sb = jnp.stack([scale, shift])                       # (2, Ctp) f32

    # ---- pass 2: normalize + affine + ReLU (tile-parallel over M, lane-dense output) ----
    out_flat = pl.pallas_call(
        bn_relu_kernel,
        out_shape=jax.ShapeDtypeStruct((Mp, Ctp), jnp.float32),
        grid=(num_tiles,),
        in_specs=[pl.BlockSpec((TILE_M, Ctp), lambda i: (i, 0)),
                  pl.BlockSpec((2, Ctp), lambda i: (0, 0))],
        out_specs=pl.BlockSpec((TILE_M, Ctp), lambda i: (i, 0)),
        compiler_params=pltpu.CompilerParams(
            dimension_semantics=("parallel",),
            vmem_limit_bytes=32 * 1024 * 1024),
    )(y, sb)

    out = out_flat[:M, :Ct].reshape(N, tH, tW, Ct)
    return jnp.transpose(out, (0, 3, 1, 2))              # back to NCHW


def reference_forward(x_nchw, w_hwio, bias, gamma, beta):
    """Pure-JAX f32 reference (conv + bias + BN(train stats) + ReLU)."""
    w_oihw = jnp.transpose(w_hwio, (3, 2, 0, 1))
    y = lax.conv_general_dilated(x_nchw, w_oihw, window_strides=(2, 2),
                                 padding=((1, 1), (1, 1)),
                                 dimension_numbers=("NCHW", "OIHW", "NCHW"))
    y = y + bias[None, :, None, None]
    mean = jnp.mean(y, axis=(0, 2, 3), keepdims=True)
    var = jnp.mean((y - mean) ** 2, axis=(0, 2, 3), keepdims=True)
    y = (y - mean) * lax.rsqrt(var + BN_EPS)
    y = gamma[None, :, None, None] * y + beta[None, :, None, None]
    return jnp.maximum(y, 0.0)


if __name__ == "__main__":
    key = jax.random.PRNGKey(0)
    k_x, k_w, k_b = jax.random.split(key, 3)

    # student feature (N, s_C, s_H, s_W); teacher feature (N, t_C, t_H, t_W) with s_H == 2*t_H
    N, s_C, s_H, s_W = 2, 8, 16, 16
    t_C, t_H, t_W = 16, 8, 8

    x = jax.random.normal(k_x, (N, s_C, s_H, s_W), jnp.float32)
    w_hwio = 0.1 * jax.random.normal(k_w, (3, 3, s_C, t_C), jnp.float32)
    bias = 0.1 * jax.random.normal(k_b, (t_C,), jnp.float32)
    gamma = jnp.ones((t_C,), jnp.float32)   # nn.BatchNorm2d default weight
    beta = jnp.zeros((t_C,), jnp.float32)   # nn.BatchNorm2d default bias

    out = jax.jit(conv_reg_forward)(x, w_hwio, bias, gamma, beta)
    out = jax.block_until_ready(out)
    assert out.shape == (N, t_C, t_H, t_W), out.shape

    ref = reference_forward(x, w_hwio, bias, gamma, beta)
    err = float(jnp.max(jnp.abs(out - ref)))
    # bf16 MXU inputs and bf16 intermediate (f32 accumulation / stats) -> loosened tolerance.
    assert jnp.allclose(out, ref, rtol=5e-2, atol=5e-2), err

    print("KERNEL_OK")
</pallas_src>

<mosaic_0001>
module attributes {stable_mosaic.version = 11 : i64} {
  func.func @conv_stats_kernel(%arg0: i32, %arg1: memref<128x128xbf16, #tpu.memory_space<vmem>>, %arg2: memref<128x128xbf16, #tpu.memory_space<vmem>>, %arg3: memref<128x128xbf16, #tpu.memory_space<vmem>>, %arg4: memref<1x2x128xf32, #tpu.memory_space<vmem>>) attributes {dimension_semantics = [#tpu.dimension_semantics<parallel>], iteration_bounds = array<i64: 1>, scalar_prefetch = 0 : i64, scratch_operands = 0 : i64, tpu.core_type = #tpu.core_type<tc>, window_params = [{transform_indices = @transform_0, window_bounds = array<i64: 128, 128>}, {pipeline_mode = #tpu.pipeline_mode<synchronous>, transform_indices = @transform_1, window_bounds = array<i64: 128, 128>}, {transform_indices = @transform_2, window_bounds = array<i64: 128, 128>}, {transform_indices = @transform_3, window_bounds = array<i64: 1, 2, 128>}]} {
    %c0 = arith.constant 0 : index
    %c0_0 = arith.constant 0 : index
    %0 = vector.load %arg1[%c0, %c0_0] : memref<128x128xbf16, #tpu.memory_space<vmem>>, vector<128x128xbf16>
    %c0_1 = arith.constant 0 : index
    %c0_2 = arith.constant 0 : index
    %1 = vector.load %arg2[%c0_1, %c0_2] : memref<128x128xbf16, #tpu.memory_space<vmem>>, vector<128x128xbf16>
    %cst = arith.constant dense<0.000000e+00> : vector<128x128xf32>
    %2 = tpu.matmul %0, %1, %cst {dimension_numbers = #tpu.dot_dimension_numbers<[1], [0], [0], [1], [0, 0, 1, 1], [], []>} : vector<128x128xbf16>, vector<128x128xbf16>, vector<128x128xf32> -> vector<128x128xf32>
    %3 = arith.truncf %2 : vector<128x128xf32> to vector<128x128xbf16>
    %c0_3 = arith.constant 0 : index
    %c0_4 = arith.constant 0 : index
    %4 = vector.load %arg3[%c0_3, %c0_4] : memref<128x128xbf16, #tpu.memory_space<vmem>>, vector<128x128xbf16>
    tpu.vector_store %arg3[%c0_3, %c0_4], %3 {strides = array<i32>} : memref<128x128xbf16, #tpu.memory_space<vmem>>, vector<128x128xbf16>,
    %cst_5 = arith.constant dense<0.000000e+00> : vector<128xf32>
    %5 = vector.multi_reduction <add>, %2, %cst_5 [0] : vector<128x128xf32> to vector<128xf32>
    %6 = vector.shape_cast %5 : vector<128xf32> to vector<1x128xf32>
    %7 = arith.mulf %2, %2 : vector<128x128xf32>
    %cst_6 = arith.constant dense<0.000000e+00> : vector<128xf32>
    %8 = vector.multi_reduction <add>, %7, %cst_6 [0] : vector<128x128xf32> to vector<128xf32>
    %9 = vector.shape_cast %8 : vector<128xf32> to vector<1x128xf32>
    %10 = tpu.concatenate %6, %9 in 0 : vector<1x128xf32>, vector<1x128xf32> -> vector<2x128xf32>
    %c0_7 = arith.constant 0 : index
    %c0_8 = arith.constant 0 : index
    %c0_9 = arith.constant 0 : index
    %11 = vector.load %arg4[%c0_7, %c0_8, %c0_9] : memref<1x2x128xf32, #tpu.memory_space<vmem>>, vector<1x2x128xf32>
    %12 = vector.shape_cast %11 : vector<1x2x128xf32> to vector<2x128xf32>
    %13 = vector.shape_cast %10 : vector<2x128xf32> to vector<1x2x128xf32>
    tpu.vector_store %arg4[%c0_7, %c0_8, %c0_9], %13 {strides = array<i32>} : memref<1x2x128xf32, #tpu.memory_space<vmem>>, vector<1x2x128xf32>,
    return
  }
  func.func @transform_0(%arg0: i32) -> (i32, i32) {
    %c0_i32 = arith.constant 0 : i32
    %c0_i32_0 = arith.constant 0 : i32
    return %arg0, %c0_i32 : i32, i32
  }
  func.func @transform_1(%arg0: i32) -> (i32, i32) {
    %c0_i32 = arith.constant 0 : i32
    %c0_i32_0 = arith.constant 0 : i32
    %c0_i32_1 = arith.constant 0 : i32
    return %c0_i32, %c0_i32_0 : i32, i32
  }
  func.func @transform_2(%arg0: i32) -> (i32, i32) {
    %c0_i32 = arith.constant 0 : i32
    %c0_i32_0 = arith.constant 0 : i32
    return %arg0, %c0_i32 : i32, i32
  }
  func.func @transform_3(%arg0: i32) -> (i32, i32, i32) {
    %c0_i32 = arith.constant 0 : i32
    %c0_i32_0 = arith.constant 0 : i32
    %c0_i32_1 = arith.constant 0 : i32
    return %arg0, %c0_i32, %c0_i32_0 : i32, i32, i32
  }
}

module attributes {stable_mosaic.version = 11 : i64} {
  func.func @bn_relu_kernel(%arg0: i32, %arg1: memref<128x128xbf16, #tpu.memory_space<vmem>>, %arg2: memref<2x128xf32, #tpu.memory_space<vmem>>, %arg3: memref<128x128xf32, #tpu.memory_space<vmem>>) attributes {dimension_semantics = [#tpu.dimension_semantics<parallel>], iteration_bounds = array<i64: 1>, scalar_prefetch = 0 : i64, scratch_operands = 0 : i64, tpu.core_type = #tpu.core_type<tc>, window_params = [{transform_indices = @transform_0, window_bounds = array<i64: 128, 128>}, {pipeline_mode = #tpu.pipeline_mode<synchronous>, transform_indices = @transform_1, window_bounds = array<i64: 2, 128>}, {transform_indices = @transform_2, window_bounds = array<i64: 128, 128>}]} {
    %c0 = arith.constant 0 : index
    %c0_0 = arith.constant 0 : index
    %0 = vector.load %arg1[%c0, %c0_0] : memref<128x128xbf16, #tpu.memory_space<vmem>>, vector<128x128xbf16>
    %1 = arith.extf %0 : vector<128x128xbf16> to vector<128x128xf32>
    %c0_1 = arith.constant 0 : index
    %c0_2 = arith.constant 0 : index
    %2 = vector.load %arg2[%c0_1, %c0_2] : memref<2x128xf32, #tpu.memory_space<vmem>>, vector<1x128xf32>
    %3 = vector.broadcast %2 : vector<1x128xf32> to vector<128x128xf32>
    %4 = arith.mulf %1, %3 : vector<128x128xf32>
    %c1 = arith.constant 1 : index
    %c0_3 = arith.constant 0 : index
    %5 = vector.load %arg2[%c1, %c0_3] : memref<2x128xf32, #tpu.memory_space<vmem>>, vector<1x128xf32>
    %6 = vector.broadcast %5 : vector<1x128xf32> to vector<128x128xf32>
    %7 = arith.addf %4, %6 : vector<128x128xf32>
    %cst = arith.constant 0.000000e+00 : f32
    %8 = vector.broadcast %cst : f32 to vector<128x128xf32>
    %9 = arith.maximumf %7, %8 : vector<128x128xf32>
    %c0_4 = arith.constant 0 : index
    %c0_5 = arith.constant 0 : index
    %10 = vector.load %arg3[%c0_4, %c0_5] : memref<128x128xf32, #tpu.memory_space<vmem>>, vector<128x128xf32>
    tpu.vector_store %arg3[%c0_4, %c0_5], %9 {strides = array<i32>} : memref<128x128xf32, #tpu.memory_space<vmem>>, vector<128x128xf32>,
    return
  }
  func.func @transform_0(%arg0: i32) -> (i32, i32) {
    %c0_i32 = arith.constant 0 : i32
    %c0_i32_0 = arith.constant 0 : i32
    return %arg0, %c0_i32 : i32, i32
  }
  func.func @transform_1(%arg0: i32) -> (i32, i32) {
    %c0_i32 = arith.constant 0 : i32
    %c0_i32_0 = arith.constant 0 : i32
    %c0_i32_1 = arith.constant 0 : i32
    return %c0_i32, %c0_i32_0 : i32, i32
  }
  func.func @transform_2(%arg0: i32) -> (i32, i32) {
    %c0_i32 = arith.constant 0 : i32
    %c0_i32_0 = arith.constant 0 : i32
    return %arg0, %c0_i32 : i32, i32
  }
}

</mosaic_0001>

<llo_original>
// kernel: conv_reg_forward.2
$region0: #{conv_reg_forward.2}
  #allocation0 [shape = 'u32[]', space=smem, size = 0x4, offset = 0x4, fixed_abs, tag = 'smem constant byte address 0x4 - core index']
  #allocation1 [shape = 'u32[72,128]{1,0:T(1,128)}', space=vmem, size = 0x9000, scoped, tag = 'internal scratch']
  %s0 = inlined_call_operand.vmem [shape: bf16[128,128], index: 0, kind: input, shape index: {}]
  %s1 = inlined_call_operand.vmem [shape: bf16[128,128], index: 1, kind: input, shape index: {}]
  %s2 = inlined_call_operand.vmem [shape: bf16[128,128], index: 2, kind: output, shape index: {0}]
  %s3 = inlined_call_operand.vmem [shape: f32[1,2,128], index: 3, kind: output, shape index: {1}]
  %4 = xla_tuple %s2, %s3
  %s5 = sld [smem:[#allocation0]]
  $region26: #{conv_reg_forward.2} parent=0
    _
  %s7 = ssub.s32 1, %s5
  %s8 = scalar_select 0, %s7, %s5
  // Predicated region
  $region2: #{conv_reg_forward.2} parent=0 // pred_check
    _
  $region3: #{conv_reg_forward.2} parent=0 // pred_check_branch
    %10 = sbr.rel (0) target = $region5
  $region4: #{conv_reg_forward.2} parent=0 // pred_region
    _
  $region5: #{conv_reg_forward.2} parent=0 // pred_fallthru
    _
  // Predicated region
  $region6: #{conv_reg_forward.2} parent=0 // pred_check
    _
  $region7: #{conv_reg_forward.2} parent=0 // pred_check_branch
    %12 = sbr.rel (0) target = $region9
  $region8: #{conv_reg_forward.2} parent=0 // pred_region
    _
  $region9: #{conv_reg_forward.2} parent=0 // pred_fallthru
    _
  %v13 = vld [vmem:[%s0] sm:$0xf]
  %v14 = vld [vmem:[%s0 + $0x4] sm:$0xf]
  %v15 = vld [vmem:[%s0 + $0x8] sm:$0xf]
  %v16 = vld [vmem:[%s0 + $0xc] sm:$0xf]
  %v17 = vld [vmem:[%s0 + $0x10] sm:$0xf]
  %v18 = vld [vmem:[%s0 + $0x14] sm:$0xf]
  %v19 = vld [vmem:[%s0 + $0x18] sm:$0xf]
  %v20 = vld [vmem:[%s0 + $0x1c] sm:$0xf]
  %v21 = vld [vmem:[%s0 + $0x20] sm:$0xf]
  %v22 = vld [vmem:[%s0 + $0x24] sm:$0xf]
  %v23 = vld [vmem:[%s0 + $0x28] sm:$0xf]
  %v24 = vld [vmem:[%s0 + $0x2c] sm:$0xf]
  %v25 = vld [vmem:[%s0 + $0x30] sm:$0xf]
  %v26 = vld [vmem:[%s0 + $0x34] sm:$0xf]
  %v27 = vld [vmem:[%s0 + $0x38] sm:$0xf]
  %v28 = vld [vmem:[%s0 + $0x3c] sm:$0xf]
  %v29 = vld [vmem:[%s1] sm:$0xf]
  %v30 = vld [vmem:[%s1 + $0x4] sm:$0xf]
  %v31 = vld [vmem:[%s1 + $0x8] sm:$0xf]
  %v32 = vld [vmem:[%s1 + $0xc] sm:$0xf]
  %v33 = vld [vmem:[%s1 + $0x10] sm:$0xf]
  %v34 = vld [vmem:[%s1 + $0x14] sm:$0xf]
  %v35 = vld [vmem:[%s1 + $0x18] sm:$0xf]
  %v36 = vld [vmem:[%s1 + $0x1c] sm:$0xf]
  %v37 = vld [vmem:[%s1 + $0x20] sm:$0xf]
  %v38 = vld [vmem:[%s1 + $0x24] sm:$0xf]
  %v39 = vld [vmem:[%s1 + $0x28] sm:$0xf]
  %v40 = vld [vmem:[%s1 + $0x2c] sm:$0xf]
  %v41 = vld [vmem:[%s1 + $0x30] sm:$0xf]
  %v42 = vld [vmem:[%s1 + $0x34] sm:$0xf]
  %v43 = vld [vmem:[%s1 + $0x38] sm:$0xf]
  %v44 = vld [vmem:[%s1 + $0x3c] sm:$0xf]
  %v61 = vunpack.c.l.b16 %v13
  %v62 = vunpack.c.l.b16 %v14
  %v63 = vunpack.c.l.b16 %v15
  %v64 = vunpack.c.l.b16 %v16
  %v65 = vunpack.c.l.b16 %v17
  %v66 = vunpack.c.l.b16 %v18
  %v67 = vunpack.c.l.b16 %v19
  %v68 = vunpack.c.l.b16 %v20
  %v69 = vunpack.c.l.b16 %v21
  %v70 = vunpack.c.l.b16 %v22
  %v71 = vunpack.c.l.b16 %v23
  %v72 = vunpack.c.l.b16 %v24
  %v73 = vunpack.c.l.b16 %v25
  %v74 = vunpack.c.l.b16 %v26
  %v75 = vunpack.c.l.b16 %v27
  %v76 = vunpack.c.l.b16 %v28
  %v77 = vpack.c.b16 %v62, %v61
  %v78 = vpack.c.b16 %v64, %v63
  %v79 = vpack.c.b16 %v66, %v65
  %v80 = vpack.c.b16 %v68, %v67
  %v81 = vpack.c.b16 %v70, %v69
  %v82 = vpack.c.b16 %v72, %v71
  %v83 = vpack.c.b16 %v74, %v73
  %v84 = vpack.c.b16 %v76, %v75
  %v109 = vunpack.c.l.b16 %v29
  %v110 = vunpack.c.l.b16 %v30
  %v111 = vunpack.c.l.b16 %v31
  %v112 = vunpack.c.l.b16 %v32
  %v113 = vunpack.c.l.b16 %v33
  %v114 = vunpack.c.l.b16 %v34
  %v115 = vunpack.c.l.b16 %v35
  %v116 = vunpack.c.l.b16 %v36
  %v117 = vunpack.c.l.b16 %v37
  %v118 = vunpack.c.l.b16 %v38
  %v119 = vunpack.c.l.b16 %v39
  %v120 = vunpack.c.l.b16 %v40
  %v121 = vunpack.c.l.b16 %v41
  %v122 = vunpack.c.l.b16 %v42
  %v123 = vunpack.c.l.b16 %v43
  %v124 = vunpack.c.l.b16 %v44
  %v125 = vpack.c.b16 %v110, %v109
  %v126 = vpack.c.b16 %v112, %v111
  %v127 = vpack.c.b16 %v114, %v113
  %v128 = vpack.c.b16 %v116, %v115
  %v129 = vpack.c.b16 %v118, %v117
  %v130 = vpack.c.b16 %v120, %v119
  %v131 = vpack.c.b16 %v122, %v121
  %v132 = vpack.c.b16 %v124, %v123
  %141 = vmatpush.bf16.msra.mxu0 %v132
  %142 = vmatpush.bf16.msra.mxu0 %v131
  %143 = vmatpush.bf16.msra.mxu0 %v130
  %144 = vmatpush.bf16.msra.mxu0 %v129
  %145 = vmatpush.bf16.msra.mxu0 %v128
  %146 = vmatpush.bf16.msra.mxu0 %v127
  %147 = vmatpush.bf16.msra.mxu0 %v126
  %148 = vmatpush.bf16.msra.mxu0 %v125
  %149 = vmatmul.bf16.gmra.mxu0 %v77
  %v150 = vpop.f32.mrf.mxu0
  %v151 = vadd.f32 0.0, %v150
  %v152 = vpop.f32.mrf.mxu0
  %v153 = vadd.f32 0.0, %v152
  %154 = vmatmul.bf16.gmra.mxu0 %v78
  %v155 = vpop.f32.mrf.mxu0
  %v156 = vadd.f32 0.0, %v155
  %v157 = vpop.f32.mrf.mxu0
  %v158 = vadd.f32 0.0, %v157
  %159 = vmatmul.bf16.gmra.mxu0 %v79
  %v160 = vpop.f32.mrf.mxu0
  %v161 = vadd.f32 0.0, %v160
  %v162 = vpop.f32.mrf.mxu0
  %v163 = vadd.f32 0.0, %v162
  %164 = vmatmul.bf16.gmra.mxu0 %v80
  %v165 = vpop.f32.mrf.mxu0
  %v166 = vadd.f32 0.0, %v165
  %v167 = vpop.f32.mrf.mxu0
  %v168 = vadd.f32 0.0, %v167
  %169 = vmatmul.bf16.gmra.mxu0 %v81
  %v170 = vpop.f32.mrf.mxu0
  %v171 = vadd.f32 0.0, %v170
  %v172 = vpop.f32.mrf.mxu0
  %v173 = vadd.f32 0.0, %v172
  %174 = vmatmul.bf16.gmra.mxu0 %v82
  %v175 = vpop.f32.mrf.mxu0
  %v176 = vadd.f32 0.0, %v175
  %v177 = vpop.f32.mrf.mxu0
  %v178 = vadd.f32 0.0, %v177
  %179 = vmatmul.bf16.gmra.mxu0 %v83
  %v180 = vpop.f32.mrf.mxu0
  %v181 = vadd.f32 0.0, %v180
  %v182 = vpop.f32.mrf.mxu0
  %v183 = vadd.f32 0.0, %v182
  %184 = vmatmul.bf16.gmra.mxu0 %v84
  %v185 = vpop.f32.mrf.mxu0
  %v186 = vadd.f32 0.0, %v185
  %v187 = vpop.f32.mrf.mxu0
  %v188 = vadd.f32 0.0, %v187
  %189 = vdwg.mxu0
  %v190 = vpack.c.bf16 %v151, %v151
  %v191 = vpack.c.bf16 %v153, %v153
  %v192 = vpack.c.bf16 %v156, %v156
  %v193 = vpack.c.bf16 %v158, %v158
  %v194 = vpack.c.bf16 %v161, %v161
  %v195 = vpack.c.bf16 %v163, %v163
  %v196 = vpack.c.bf16 %v166, %v166
  %v197 = vpack.c.bf16 %v168, %v168
  %v198 = vpack.c.bf16 %v171, %v171
  %v199 = vpack.c.bf16 %v173, %v173
  %v200 = vpack.c.bf16 %v176, %v176
  %v201 = vpack.c.bf16 %v178, %v178
  %v202 = vpack.c.bf16 %v181, %v181
  %v203 = vpack.c.bf16 %v183, %v183
  %v204 = vpack.c.bf16 %v186, %v186
  %v205 = vpack.c.bf16 %v188, %v188
  %206 = vst [vmem:[%s2] sm:$0xf] %v190
  %207 = vst [vmem:[%s2 + $0x4] sm:$0xf] %v191
  %208 = vst [vmem:[%s2 + $0x8] sm:$0xf] %v192
  %209 = vst [vmem:[%s2 + $0xc] sm:$0xf] %v193
  %210 = vst [vmem:[%s2 + $0x10] sm:$0xf] %v194
  %211 = vst [vmem:[%s2 + $0x14] sm:$0xf] %v195
  %212 = vst [vmem:[%s2 + $0x18] sm:$0xf] %v196
  %213 = vst [vmem:[%s2 + $0x1c] sm:$0xf] %v197
  %214 = vst [vmem:[%s2 + $0x20] sm:$0xf] %v198
  %215 = vst [vmem:[%s2 + $0x24] sm:$0xf] %v199
  %216 = vst [vmem:[%s2 + $0x28] sm:$0xf] %v200
  %217 = vst [vmem:[%s2 + $0x2c] sm:$0xf] %v201
  %218 = vst [vmem:[%s2 + $0x30] sm:$0xf] %v202
  %219 = vst [vmem:[%s2 + $0x34] sm:$0xf] %v203
  %220 = vst [vmem:[%s2 + $0x38] sm:$0xf] %v204
  %221 = vst [vmem:[%s2 + $0x3c] sm:$0xf] %v205
  %v222 = vadd.f32 %v151, %v153
  %v223 = vadd.f32 %v222, %v156
  %v224 = vadd.f32 %v223, %v158
  %v225 = vadd.f32 %v224, %v161
  %v226 = vadd.f32 %v225, %v163
  %v227 = vadd.f32 %v226, %v166
  %v228 = vadd.f32 %v227, %v168
  %v229 = vadd.f32 %v228, %v171
  %v230 = vadd.f32 %v229, %v173
  %v231 = vadd.f32 %v230, %v176
  %v232 = vadd.f32 %v231, %v178
  %v233 = vadd.f32 %v232, %v181
  %v234 = vadd.f32 %v233, %v183
  %v235 = vadd.f32 %v234, %v186
  %v236 = vadd.f32 %v235, %v188
  %v237 = vrot.slane %v236, 4
  %v238 = vadd.f32 %v236, %v237
  %v239 = vrot.slane %v238, 2
  %v240 = vadd.f32 %v238, %v239
  %v241 = vrot.slane %v240, 1
  %v242 = vadd.f32 %v240, %v241
  %v243 = vmul.f32 %v151, %v151
  %v244 = vmul.f32 %v153, %v153
  %v245 = vmul.f32 %v156, %v156
  %v246 = vmul.f32 %v158, %v158
  %v247 = vmul.f32 %v161, %v161
  %v248 = vmul.f32 %v163, %v163
  %v249 = vmul.f32 %v166, %v166
  %v250 = vmul.f32 %v168, %v168
  %v251 = vmul.f32 %v171, %v171
  %v252 = vmul.f32 %v173, %v173
  %v253 = vmul.f32 %v176, %v176
  %v254 = vmul.f32 %v178, %v178
  %v255 = vmul.f32 %v181, %v181
  %v256 = vmul.f32 %v183, %v183
  %v257 = vmul.f32 %v186, %v186
  %v258 = vmul.f32 %v188, %v188
  %v259 = vadd.f32 %v243, %v244
  %v260 = vadd.f32 %v259, %v245
  %v261 = vadd.f32 %v260, %v246
  %v262 = vadd.f32 %v261, %v247
  %v263 = vadd.f32 %v262, %v248
  %v264 = vadd.f32 %v263, %v249
  %v265 = vadd.f32 %v264, %v250
  %v266 = vadd.f32 %v265, %v251
  %v267 = vadd.f32 %v266, %v252
  %v268 = vadd.f32 %v267, %v253
  %v269 = vadd.f32 %v268, %v254
  %v270 = vadd.f32 %v269, %v255
  %v271 = vadd.f32 %v270, %v256
  %v272 = vadd.f32 %v271, %v257
  %v273 = vadd.f32 %v272, %v258
  %v274 = vrot.slane %v273, 4
  %v275 = vadd.f32 %v273, %v274
  %v276 = vrot.slane %v275, 2
  %v277 = vadd.f32 %v275, %v276
  %v278 = vrot.slane %v277, 1
  %v279 = vadd.f32 %v277, %v278
  %vm280 = vcmask 1040384
  %v281 = vsel %vm280, %v242, %v279
  %282 = vst [vmem:[%s3] sm:$0x3] %v281
  // Predicated region
  $region10: #{conv_reg_forward.2} parent=0 // pred_check
    _
  $region11: #{conv_reg_forward.2} parent=0 // pred_check_branch
    %284 = sbr.rel (0) target = $region13
  $region12: #{conv_reg_forward.2} parent=0 // pred_region
    _
  $region13: #{conv_reg_forward.2} parent=0 // pred_fallthru
    _
  // Predicated region
  $region14: #{conv_reg_forward.2} parent=0 // pred_check
    _
  $region15: #{conv_reg_forward.2} parent=0 // pred_check_branch
    %286 = sbr.rel (0) target = $region17
  $region16: #{conv_reg_forward.2} parent=0 // pred_region
    _
  $region17: #{conv_reg_forward.2} parent=0 // pred_fallthru
    _
  // Predicated region
  $region18: #{conv_reg_forward.2} parent=0 // pred_check
    _
  $region19: #{conv_reg_forward.2} parent=0 // pred_check_branch
    %288 = sbr.rel (0) target = $region21
  $region20: #{conv_reg_forward.2} parent=0 // pred_region
    _
  $region21: #{conv_reg_forward.2} parent=0 // pred_fallthru
    _
  // Predicated region
  $region22: #{conv_reg_forward.2} parent=0 // pred_check
    _
  $region23: #{conv_reg_forward.2} parent=0 // pred_check_branch
    %290 = sbr.rel (0) target = $region25
  $region24: #{conv_reg_forward.2} parent=0 // pred_region
    _
  $region25: #{conv_reg_forward.2} parent=0 // pred_fallthru
    _

// kernel: conv_reg_forward.3
$region0: #{conv_reg_forward.3}
  #allocation0 [shape = 'u32[]', space=smem, size = 0x4, offset = 0x4, fixed_abs, tag = 'smem constant byte address 0x4 - core index']
  #allocation1 [shape = 'u32[72,128]{1,0:T(1,128)}', space=vmem, size = 0x9000, scoped, tag = 'internal scratch']
  %s0 = inlined_call_operand.vmem [shape: bf16[128,128], index: 0, kind: input, shape index: {}]
  %s1 = inlined_call_operand.vmem [shape: f32[2,128], index: 1, kind: input, shape index: {}]
  %s2 = inlined_call_operand.hbm [shape: f32[128,128], index: 2, kind: output, shape index: {}]
  %s3 = sld [smem:[#allocation0]]
  $region18: #{conv_reg_forward.3} parent=0
    _
  %s5 = ssub.s32 1, %s3
  %s6 = scalar_select 0, %s5, %s3
  $region1: #{conv_reg_forward.3} parent=0
    #allocation2 [shape = 'u8[65536]{0}', space=vmem, size = 0x10000, scoped, tag = 'output window, operand 0, single buffered']
    #allocation3 [shape = 's32[1]{0}', space=sflag, size = 0x4, scoped, tag = 'scoped memory for conv_reg_forward.3']
    %7 = vsyncpa [#allocation3], 0
    // Predicated region
    $region2: #{conv_reg_forward.3} parent=1 // pred_check
      _
    $region3: #{conv_reg_forward.3} parent=1 // pred_check_branch
      %9 = sbr.rel (0) target = $region5
    $region4: #{conv_reg_forward.3} parent=1 // pred_region
      _
    $region5: #{conv_reg_forward.3} parent=1 // pred_fallthru
      _
    // Predicated region
    $region6: #{conv_reg_forward.3} parent=1 // pred_check
      _
    $region7: #{conv_reg_forward.3} parent=1 // pred_check_branch
      %11 = sbr.rel (0) target = $region9
    $region8: #{conv_reg_forward.3} parent=1 // pred_region
      _
    $region9: #{conv_reg_forward.3} parent=1 // pred_fallthru
      _
    %v12 = vld [vmem:[%s0] sm:$0xf]
    %v13 = vld [vmem:[%s0 + $0x4] sm:$0xf]
    %v14 = vld [vmem:[%s0 + $0x8] sm:$0xf]
    %v15 = vld [vmem:[%s0 + $0xc] sm:$0xf]
    %v16 = vld [vmem:[%s0 + $0x10] sm:$0xf]
    %v17 = vld [vmem:[%s0 + $0x14] sm:$0xf]
    %v18 = vld [vmem:[%s0 + $0x18] sm:$0xf]
    %v19 = vld [vmem:[%s0 + $0x1c] sm:$0xf]
    %v20 = vld [vmem:[%s0 + $0x20] sm:$0xf]
    %v21 = vld [vmem:[%s0 + $0x24] sm:$0xf]
    %v22 = vld [vmem:[%s0 + $0x28] sm:$0xf]
    %v23 = vld [vmem:[%s0 + $0x2c] sm:$0xf]
    %v24 = vld [vmem:[%s0 + $0x30] sm:$0xf]
    %v25 = vld [vmem:[%s0 + $0x34] sm:$0xf]
    %v26 = vld [vmem:[%s0 + $0x38] sm:$0xf]
    %v27 = vld [vmem:[%s0 + $0x3c] sm:$0xf]
    %v28 = vunpack.c.l.bf16 %v12
    %v29 = vunpack.c.l.bf16 %v13
    %v30 = vunpack.c.l.bf16 %v14
    %v31 = vunpack.c.l.bf16 %v15
    %v32 = vunpack.c.l.bf16 %v16
    %v33 = vunpack.c.l.bf16 %v17
    %v34 = vunpack.c.l.bf16 %v18
    %v35 = vunpack.c.l.bf16 %v19
    %v36 = vunpack.c.l.bf16 %v20
    %v37 = vunpack.c.l.bf16 %v21
    %v38 = vunpack.c.l.bf16 %v22
    %v39 = vunpack.c.l.bf16 %v23
    %v40 = vunpack.c.l.bf16 %v24
    %v41 = vunpack.c.l.bf16 %v25
    %v42 = vunpack.c.l.bf16 %v26
    %v43 = vunpack.c.l.bf16 %v27
    %v44 = vld [vmem:[%s1] sm:$0x1]
    %v45 = vperm.slane %v44, 0
    %v46 = vmul.f32 %v28, %v45
    %v47 = vmul.f32 %v29, %v45
    %v48 = vmul.f32 %v30, %v45
    %v49 = vmul.f32 %v31, %v45
    %v50 = vmul.f32 %v32, %v45
    %v51 = vmul.f32 %v33, %v45
    %v52 = vmul.f32 %v34, %v45
    %v53 = vmul.f32 %v35, %v45
    %v54 = vmul.f32 %v36, %v45
    %v55 = vmul.f32 %v37, %v45
    %v56 = vmul.f32 %v38, %v45
    %v57 = vmul.f32 %v39, %v45
    %v58 = vmul.f32 %v40, %v45
    %v59 = vmul.f32 %v41, %v45
    %v60 = vmul.f32 %v42, %v45
    %v61 = vmul.f32 %v43, %v45
    %v62 = vld [vmem:[%s1 + $0x1] sm:$0x1]
    %v63 = vperm.slane %v62, 0
    %v64 = vadd.f32 %v46, %v63
    %v65 = vadd.f32 %v47, %v63
    %v66 = vadd.f32 %v48, %v63
    %v67 = vadd.f32 %v49, %v63
    %v68 = vadd.f32 %v50, %v63
    %v69 = vadd.f32 %v51, %v63
    %v70 = vadd.f32 %v52, %v63
    %v71 = vadd.f32 %v53, %v63
    %v72 = vadd.f32 %v54, %v63
    %v73 = vadd.f32 %v55, %v63
    %v74 = vadd.f32 %v56, %v63
    %v75 = vadd.f32 %v57, %v63
    %v76 = vadd.f32 %v58, %v63
    %v77 = vadd.f32 %v59, %v63
    %v78 = vadd.f32 %v60, %v63
    %v79 = vadd.f32 %v61, %v63
    %v80 = vmax.f32 %v64, 0.0
    %v81 = vmax.f32 %v65, 0.0
    %v82 = vmax.f32 %v66, 0.0
    %v83 = vmax.f32 %v67, 0.0
    %v84 = vmax.f32 %v68, 0.0
    %v85 = vmax.f32 %v69, 0.0
    %v86 = vmax.f32 %v70, 0.0
    %v87 = vmax.f32 %v71, 0.0
    %v88 = vmax.f32 %v72, 0.0
    %v89 = vmax.f32 %v73, 0.0
    %v90 = vmax.f32 %v74, 0.0
    %v91 = vmax.f32 %v75, 0.0
    %v92 = vmax.f32 %v76, 0.0
    %v93 = vmax.f32 %v77, 0.0
    %v94 = vmax.f32 %v78, 0.0
    %v95 = vmax.f32 %v79, 0.0
    %96 = vst [vmem:[#allocation2] sm:$0xff] %v80
    %97 = vst [vmem:[#allocation2 + $0x8] sm:$0xff] %v81
    %98 = vst [vmem:[#allocation2 + $0x10] sm:$0xff] %v82
    %99 = vst [vmem:[#allocation2 + $0x18] sm:$0xff] %v83
    %100 = vst [vmem:[#allocation2 + $0x20] sm:$0xff] %v84
    %101 = vst [vmem:[#allocation2 + $0x28] sm:$0xff] %v85
    %102 = vst [vmem:[#allocation2 + $0x30] sm:$0xff] %v86
    %103 = vst [vmem:[#allocation2 + $0x38] sm:$0xff] %v87
    %104 = vst [vmem:[#allocation2 + $0x40] sm:$0xff] %v88
    %105 = vst [vmem:[#allocation2 + $0x48] sm:$0xff] %v89
    %106 = vst [vmem:[#allocation2 + $0x50] sm:$0xff] %v90
    %107 = vst [vmem:[#allocation2 + $0x58] sm:$0xff] %v91
    %108 = vst [vmem:[#allocation2 + $0x60] sm:$0xff] %v92
    %109 = vst [vmem:[#allocation2 + $0x68] sm:$0xff] %v93
    %110 = vst [vmem:[#allocation2 + $0x70] sm:$0xff] %v94
    %111 = vst [vmem:[#allocation2 + $0x78] sm:$0xff] %v95
    // Predicated region
    $region10: #{conv_reg_forward.3} parent=1 // pred_check
      _
    $region11: #{conv_reg_forward.3} parent=1 // pred_check_branch
      %113 = sbr.rel (0) target = $region13
    $region12: #{conv_reg_forward.3} parent=1 // pred_region
      %115 = vsyncadd [#allocation3], 0
      %s116 = sshll.u32 [#allocation2], 4
      %s117 = int_to_ptr.vmem [resolvable:$true] %s116
      %s118 = sshll.u32 %s2, 4
      %s119 = int_to_ptr.hbm [resolvable:$true] %s118
      %124 = dma.vmem_to_hbm [thread:$0]  %s117, 2048, %s119, [#allocation3], 128, 128, 8
    $region13: #{conv_reg_forward.3} parent=1 // pred_fallthru
      _
    // Predicated region
    $region14: #{conv_reg_forward.3} parent=1 // pred_check
      _
    $region15: #{conv_reg_forward.3} parent=1 // pred_check_branch
      %126 = sbr.rel (0) target = $region17
    $region16: #{conv_reg_forward.3} parent=1 // pred_region
      %128 = dma.done [#allocation3], 2048
    $region17: #{conv_reg_forward.3} parent=1 // pred_fallthru
      _
    %129 = vsyncpa [#allocation3], 1

</llo_original>
